<compile_context>
chip_gen: v5e
topology: v5e:2x2
jax: 0.10.0
libtpu: 0.0.40
codegen_flags: <defaults>
</compile_context>

<pallas_src>
import math
import functools

import jax
import jax.numpy as jnp
from jax import lax
from jax.experimental import pallas as pl
from jax.experimental.pallas import tpu as pltpu


def _mha_kernel(x_ref, maskb_ref, wqkv_ref, bqkv_ref, wp_ref, bp_ref, o_ref, *,
                n_heads, head_size):
    x = x_ref[0]                 # (T, E)
    mask_bias = maskb_ref[0]     # (1, T) additive: 0.0 = keep, -1e9 = padded key

    # Fused Q/K/V projection: one MXU matmul instead of 3*H tiny ones.
    # (1/sqrt(head_size) is already folded into the Q columns on the host.)
    qkv = jnp.dot(x, wqkv_ref[...], preferred_element_type=jnp.float32)
    qkv = qkv + bqkv_ref[...]                       # (T, 3*H*hs)
    hh = n_heads * head_size
    q = qkv[:, 0 * hh:1 * hh]
    k = qkv[:, 1 * hh:2 * hh]
    v = qkv[:, 2 * hh:3 * hh]

    head_outs = []
    for h in range(n_heads):     # static unroll; H is small and compile-time known
        sl = slice(h * head_size, (h + 1) * head_size)
        qh, kh, vh = q[:, sl], k[:, sl], v[:, sl]
        # scores = qh @ kh^T — contract last dims (native transposed-operand path).
        scores = lax.dot_general(qh, kh, (((1,), (1,)), ((), ())),
                                 preferred_element_type=jnp.float32)   # (T, T)
        scores = scores + mask_bias                  # mask padded key positions
        s_max = jnp.max(scores, axis=-1, keepdims=True)
        p = jnp.exp(scores - s_max)
        denom = jnp.sum(p, axis=-1, keepdims=True)
        attn = p * pl.reciprocal(denom, approx=True)
        # TODO(synk): F.dropout on attention weights is a no-op here (inference mode).
        head_outs.append(jnp.dot(attn, vh, preferred_element_type=jnp.float32))

    # torch.cat over heads + projection Linear, fused into one matmul.
    concat = jnp.concatenate(head_outs, axis=-1)     # (T, H*hs)
    out = jnp.dot(concat, wp_ref[...], preferred_element_type=jnp.float32)
    o_ref[0] = (out + bp_ref[...]).astype(o_ref.dtype)


def multi_head_attention(x, padding_mask, params, *, n_heads, head_size):
    """x: (B, T, E) f32.  padding_mask: (B, T) f32 (0.0 = pad).  Returns (B, T, E)."""
    B, T, E = x.shape
    H, hs = n_heads, head_size
    wq, bq, wk, bk, wv, bv, wp, bp = params          # PyTorch Linear layouts

    # Host-side prep (cheap, one-time): transpose + fuse weights so the kernel only
    # does x @ W, and fold the attention scale into the Q projection.
    scale = 1.0 / math.sqrt(hs)

    def stack_t(w):  # (H, hs, E) -> (E, H*hs); column block h*hs:(h+1)*hs == head h
        return jnp.transpose(w, (2, 0, 1)).reshape(E, H * hs)

    wqkv = jnp.concatenate([stack_t(wq) * scale, stack_t(wk), stack_t(wv)], axis=1)
    bqkv = jnp.concatenate([bq.reshape(-1) * scale, bk.reshape(-1), bv.reshape(-1)])
    bqkv = bqkv.reshape(1, 3 * H * hs)
    wp_t = wp.T                                      # (H*hs, E)
    bp2 = bp.reshape(1, E)

    # Additive key mask: 0.0 where kept, -1e9 where padded (matches masked_fill(-1e9)).
    mask_bias = jnp.where(padding_mask == 0.0,
                          jnp.float32(-1e9), jnp.float32(0.0)).reshape(B, 1, T)

    kernel = functools.partial(_mha_kernel, n_heads=H, head_size=hs)

    grid_spec = pltpu.PrefetchScalarGridSpec(
        num_scalar_prefetch=0,
        grid=(B,),
        in_specs=[
            pl.BlockSpec((1, T, E), lambda b: (b, 0, 0)),        # x
            pl.BlockSpec((1, 1, T), lambda b: (b, 0, 0)),        # additive key mask
            pl.BlockSpec((E, 3 * H * hs), lambda b: (0, 0)),     # Wqkv  (resident)
            pl.BlockSpec((1, 3 * H * hs), lambda b: (0, 0)),     # bqkv  (resident)
            pl.BlockSpec((H * hs, E), lambda b: (0, 0)),         # Wp^T  (resident)
            pl.BlockSpec((1, E), lambda b: (0, 0)),              # bp    (resident)
        ],
        out_specs=pl.BlockSpec((1, T, E), lambda b: (b, 0, 0)),
    )

    return pl.pallas_call(
        kernel,
        out_shape=jax.ShapeDtypeStruct((B, T, E), x.dtype),
        grid_spec=grid_spec,
        compiler_params=pltpu.CompilerParams(
            dimension_semantics=("parallel",)),
    )(x, mask_bias, wqkv, bqkv, wp_t, bp2)


def _reference(x, padding_mask, params, *, n_heads, head_size):
    wq, bq, wk, bk, wv, bv, wp, bp = params
    outs = []
    for h in range(n_heads):
        q = x @ wq[h].T + bq[h]
        k = x @ wk[h].T + bk[h]
        v = x @ wv[h].T + bv[h]
        s = (q @ jnp.swapaxes(k, -1, -2)) / math.sqrt(head_size)
        s = jnp.where(padding_mask[:, None, :] == 0.0, -1e9, s)
        w = jax.nn.softmax(s, axis=-1)
        outs.append(w @ v)
    cat = jnp.concatenate(outs, axis=-1)
    return cat @ wp.T + bp


if __name__ == "__main__":
    # Small shapes consistent with the module's forward: (batch, seq, n_embd)
    B, T = 2, 8
    n_heads, head_size, n_embd = 4, 8, 32
    dropout_rate = 0.1  # no-op at inference

    key = jax.random.PRNGKey(0)
    ks = jax.random.split(key, 10)
    scale_h = 1.0 / math.sqrt(n_embd)
    scale_p = 1.0 / math.sqrt(n_heads * head_size)

    # Stacked per-head parameters (PyTorch Linear: weight (out, in), bias (out,))
    wq = jax.random.uniform(ks[0], (n_heads, head_size, n_embd), jnp.float32, -scale_h, scale_h)
    bq = jax.random.uniform(ks[1], (n_heads, head_size), jnp.float32, -scale_h, scale_h)
    wk = jax.random.uniform(ks[2], (n_heads, head_size, n_embd), jnp.float32, -scale_h, scale_h)
    bk = jax.random.uniform(ks[3], (n_heads, head_size), jnp.float32, -scale_h, scale_h)
    wv = jax.random.uniform(ks[4], (n_heads, head_size, n_embd), jnp.float32, -scale_h, scale_h)
    bv = jax.random.uniform(ks[5], (n_heads, head_size), jnp.float32, -scale_h, scale_h)
    # Projection Linear(H*hs -> E): weight (E, H*hs), bias (E,)  (PyTorch layout)
    wp = jax.random.uniform(ks[6], (n_embd, n_heads * head_size), jnp.float32, -scale_p, scale_p)
    bp = jax.random.uniform(ks[7], (n_embd,), jnp.float32, -scale_p, scale_p)

    x = jax.random.normal(ks[8], (B, T, n_embd), jnp.float32)
    # padding mask: 1.0 = keep, 0.0 = pad (last two positions of batch 1 padded)
    padding_mask = jnp.ones((B, T), jnp.float32).at[1, -2:].set(0.0)

    params = (wq, bq, wk, bk, wv, bv, wp, bp)

    out = multi_head_attention(x, padding_mask, params,
                               n_heads=n_heads, head_size=head_size)
    out = jax.block_until_ready(out)

    ref = _reference(x, padding_mask, params, n_heads=n_heads, head_size=head_size)
    assert out.shape == (B, T, n_embd)
    # tolerance slightly loosened for pl.reciprocal(approx=True) in the softmax
    assert jnp.allclose(out, ref, atol=2e-3, rtol=2e-3), "mismatch vs reference"

    print("KERNEL_OK")
</pallas_src>

<mosaic_0001>
module attributes {stable_mosaic.version = 11 : i64} {
  func.func @_mha_kernel(%arg0: i32, %arg1: memref<1x8x32xf32, #tpu.memory_space<vmem>>, %arg2: memref<1x1x8xf32, #tpu.memory_space<vmem>>, %arg3: memref<32x96xf32, #tpu.memory_space<vmem>>, %arg4: memref<1x96xf32, #tpu.memory_space<vmem>>, %arg5: memref<32x32xf32, #tpu.memory_space<vmem>>, %arg6: memref<1x32xf32, #tpu.memory_space<vmem>>, %arg7: memref<1x8x32xf32, #tpu.memory_space<vmem>>) attributes {dimension_semantics = [#tpu.dimension_semantics<parallel>], iteration_bounds = array<i64: 2>, scalar_prefetch = 0 : i64, scratch_operands = 0 : i64, tpu.core_type = #tpu.core_type<tc>, window_params = [{transform_indices = @transform_0, window_bounds = array<i64: 1, 8, 32>}, {transform_indices = @transform_1, window_bounds = array<i64: 1, 1, 8>}, {pipeline_mode = #tpu.pipeline_mode<synchronous>, transform_indices = @transform_2, window_bounds = array<i64: 32, 96>}, {pipeline_mode = #tpu.pipeline_mode<synchronous>, transform_indices = @transform_3, window_bounds = array<i64: 1, 96>}, {pipeline_mode = #tpu.pipeline_mode<synchronous>, transform_indices = @transform_4, window_bounds = array<i64: 32, 32>}, {pipeline_mode = #tpu.pipeline_mode<synchronous>, transform_indices = @transform_5, window_bounds = array<i64: 1, 32>}, {transform_indices = @transform_6, window_bounds = array<i64: 1, 8, 32>}]} {
    %c0 = arith.constant 0 : index
    %c0_0 = arith.constant 0 : index
    %c0_1 = arith.constant 0 : index
    %0 = vector.load %arg1[%c0, %c0_0, %c0_1] : memref<1x8x32xf32, #tpu.memory_space<vmem>>, vector<1x8x32xf32>
    %1 = vector.shape_cast %0 : vector<1x8x32xf32> to vector<8x32xf32>
    %c0_2 = arith.constant 0 : index
    %c0_3 = arith.constant 0 : index
    %c0_4 = arith.constant 0 : index
    %2 = vector.load %arg2[%c0_2, %c0_3, %c0_4] : memref<1x1x8xf32, #tpu.memory_space<vmem>>, vector<1x1x8xf32>
    %3 = vector.shape_cast %2 : vector<1x1x8xf32> to vector<1x8xf32>
    %c0_5 = arith.constant 0 : index
    %c0_6 = arith.constant 0 : index
    %4 = vector.load %arg3[%c0_5, %c0_6] : memref<32x96xf32, #tpu.memory_space<vmem>>, vector<32x96xf32>
    %cst = arith.constant dense<0.000000e+00> : vector<8x96xf32>
    %5 = tpu.matmul %1, %4, %cst {dimension_numbers = #tpu.dot_dimension_numbers<[1], [0], [0], [1], [0, 0, 1, 1], [], []>} : vector<8x32xf32>, vector<32x96xf32>, vector<8x96xf32> -> vector<8x96xf32>
    %c0_7 = arith.constant 0 : index
    %c0_8 = arith.constant 0 : index
    %6 = vector.load %arg4[%c0_7, %c0_8] : memref<1x96xf32, #tpu.memory_space<vmem>>, vector<1x96xf32>
    %7 = vector.broadcast %6 : vector<1x96xf32> to vector<8x96xf32>
    %8 = arith.addf %5, %7 : vector<8x96xf32>
    %9 = vector.extract_strided_slice %8 {offsets = [0, 0], sizes = [8, 32], strides = [1, 1]} : vector<8x96xf32> to vector<8x32xf32>
    %10 = vector.extract_strided_slice %8 {offsets = [0, 32], sizes = [8, 32], strides = [1, 1]} : vector<8x96xf32> to vector<8x32xf32>
    %11 = vector.extract_strided_slice %8 {offsets = [0, 64], sizes = [8, 32], strides = [1, 1]} : vector<8x96xf32> to vector<8x32xf32>
    %12 = vector.extract_strided_slice %9 {offsets = [0, 0], sizes = [8, 8], strides = [1, 1]} : vector<8x32xf32> to vector<8x8xf32>
    %13 = vector.extract_strided_slice %10 {offsets = [0, 0], sizes = [8, 8], strides = [1, 1]} : vector<8x32xf32> to vector<8x8xf32>
    %14 = vector.extract_strided_slice %11 {offsets = [0, 0], sizes = [8, 8], strides = [1, 1]} : vector<8x32xf32> to vector<8x8xf32>
    %cst_9 = arith.constant dense<0.000000e+00> : vector<8x8xf32>
    %15 = tpu.matmul %12, %13, %cst_9 {dimension_numbers = #tpu.dot_dimension_numbers<[1], [1], [0], [0], [0, 0, 1, 0], [], []>} : vector<8x8xf32>, vector<8x8xf32>, vector<8x8xf32> -> vector<8x8xf32>
    %16 = vector.broadcast %3 : vector<1x8xf32> to vector<8x8xf32>
    %17 = arith.addf %15, %16 : vector<8x8xf32>
    %cst_10 = arith.constant dense<0xFF800000> : vector<8xf32>
    %18 = vector.multi_reduction <maximumf>, %17, %cst_10 [1] : vector<8x8xf32> to vector<8xf32>
    %19 = vector.shape_cast %18 : vector<8xf32> to vector<8x1xf32>
    %20 = vector.broadcast %19 : vector<8x1xf32> to vector<8x8xf32>
    %21 = arith.subf %17, %20 : vector<8x8xf32>
    %22 = math.exp %21 : vector<8x8xf32>
    %cst_11 = arith.constant dense<0.000000e+00> : vector<8xf32>
    %23 = vector.multi_reduction <add>, %22, %cst_11 [1] : vector<8x8xf32> to vector<8xf32>
    %24 = vector.shape_cast %23 : vector<8xf32> to vector<8x1xf32>
    %25 = tpu.reciprocal %24 {approx = true} : vector<8x1xf32> -> vector<8x1xf32>
    %26 = vector.broadcast %25 : vector<8x1xf32> to vector<8x8xf32>
    %27 = arith.mulf %22, %26 : vector<8x8xf32>
    %cst_12 = arith.constant dense<0.000000e+00> : vector<8x8xf32>
    %28 = tpu.matmul %27, %14, %cst_12 {dimension_numbers = #tpu.dot_dimension_numbers<[1], [0], [0], [1], [0, 0, 1, 1], [], []>} : vector<8x8xf32>, vector<8x8xf32>, vector<8x8xf32> -> vector<8x8xf32>
    %29 = vector.extract_strided_slice %9 {offsets = [0, 8], sizes = [8, 8], strides = [1, 1]} : vector<8x32xf32> to vector<8x8xf32>
    %30 = vector.extract_strided_slice %10 {offsets = [0, 8], sizes = [8, 8], strides = [1, 1]} : vector<8x32xf32> to vector<8x8xf32>
    %31 = vector.extract_strided_slice %11 {offsets = [0, 8], sizes = [8, 8], strides = [1, 1]} : vector<8x32xf32> to vector<8x8xf32>
    %cst_13 = arith.constant dense<0.000000e+00> : vector<8x8xf32>
    %32 = tpu.matmul %29, %30, %cst_13 {dimension_numbers = #tpu.dot_dimension_numbers<[1], [1], [0], [0], [0, 0, 1, 0], [], []>} : vector<8x8xf32>, vector<8x8xf32>, vector<8x8xf32> -> vector<8x8xf32>
    %33 = vector.broadcast %3 : vector<1x8xf32> to vector<8x8xf32>
    %34 = arith.addf %32, %33 : vector<8x8xf32>
    %cst_14 = arith.constant dense<0xFF800000> : vector<8xf32>
    %35 = vector.multi_reduction <maximumf>, %34, %cst_14 [1] : vector<8x8xf32> to vector<8xf32>
    %36 = vector.shape_cast %35 : vector<8xf32> to vector<8x1xf32>
    %37 = vector.broadcast %36 : vector<8x1xf32> to vector<8x8xf32>
    %38 = arith.subf %34, %37 : vector<8x8xf32>
    %39 = math.exp %38 : vector<8x8xf32>
    %cst_15 = arith.constant dense<0.000000e+00> : vector<8xf32>
    %40 = vector.multi_reduction <add>, %39, %cst_15 [1] : vector<8x8xf32> to vector<8xf32>
    %41 = vector.shape_cast %40 : vector<8xf32> to vector<8x1xf32>
    %42 = tpu.reciprocal %41 {approx = true} : vector<8x1xf32> -> vector<8x1xf32>
    %43 = vector.broadcast %42 : vector<8x1xf32> to vector<8x8xf32>
    %44 = arith.mulf %39, %43 : vector<8x8xf32>
    %cst_16 = arith.constant dense<0.000000e+00> : vector<8x8xf32>
    %45 = tpu.matmul %44, %31, %cst_16 {dimension_numbers = #tpu.dot_dimension_numbers<[1], [0], [0], [1], [0, 0, 1, 1], [], []>} : vector<8x8xf32>, vector<8x8xf32>, vector<8x8xf32> -> vector<8x8xf32>
    %46 = vector.extract_strided_slice %9 {offsets = [0, 16], sizes = [8, 8], strides = [1, 1]} : vector<8x32xf32> to vector<8x8xf32>
    %47 = vector.extract_strided_slice %10 {offsets = [0, 16], sizes = [8, 8], strides = [1, 1]} : vector<8x32xf32> to vector<8x8xf32>
    %48 = vector.extract_strided_slice %11 {offsets = [0, 16], sizes = [8, 8], strides = [1, 1]} : vector<8x32xf32> to vector<8x8xf32>
    %cst_17 = arith.constant dense<0.000000e+00> : vector<8x8xf32>
    %49 = tpu.matmul %46, %47, %cst_17 {dimension_numbers = #tpu.dot_dimension_numbers<[1], [1], [0], [0], [0, 0, 1, 0], [], []>} : vector<8x8xf32>, vector<8x8xf32>, vector<8x8xf32> -> vector<8x8xf32>
    %50 = vector.broadcast %3 : vector<1x8xf32> to vector<8x8xf32>
    %51 = arith.addf %49, %50 : vector<8x8xf32>
    %cst_18 = arith.constant dense<0xFF800000> : vector<8xf32>
    %52 = vector.multi_reduction <maximumf>, %51, %cst_18 [1] : vector<8x8xf32> to vector<8xf32>
    %53 = vector.shape_cast %52 : vector<8xf32> to vector<8x1xf32>
    %54 = vector.broadcast %53 : vector<8x1xf32> to vector<8x8xf32>
    %55 = arith.subf %51, %54 : vector<8x8xf32>
    %56 = math.exp %55 : vector<8x8xf32>
    %cst_19 = arith.constant dense<0.000000e+00> : vector<8xf32>
    %57 = vector.multi_reduction <add>, %56, %cst_19 [1] : vector<8x8xf32> to vector<8xf32>
    %58 = vector.shape_cast %57 : vector<8xf32> to vector<8x1xf32>
    %59 = tpu.reciprocal %58 {approx = true} : vector<8x1xf32> -> vector<8x1xf32>
    %60 = vector.broadcast %59 : vector<8x1xf32> to vector<8x8xf32>
    %61 = arith.mulf %56, %60 : vector<8x8xf32>
    %cst_20 = arith.constant dense<0.000000e+00> : vector<8x8xf32>
    %62 = tpu.matmul %61, %48, %cst_20 {dimension_numbers = #tpu.dot_dimension_numbers<[1], [0], [0], [1], [0, 0, 1, 1], [], []>} : vector<8x8xf32>, vector<8x8xf32>, vector<8x8xf32> -> vector<8x8xf32>
    %63 = vector.extract_strided_slice %9 {offsets = [0, 24], sizes = [8, 8], strides = [1, 1]} : vector<8x32xf32> to vector<8x8xf32>
    %64 = vector.extract_strided_slice %10 {offsets = [0, 24], sizes = [8, 8], strides = [1, 1]} : vector<8x32xf32> to vector<8x8xf32>
    %65 = vector.extract_strided_slice %11 {offsets = [0, 24], sizes = [8, 8], strides = [1, 1]} : vector<8x32xf32> to vector<8x8xf32>
    %cst_21 = arith.constant dense<0.000000e+00> : vector<8x8xf32>
    %66 = tpu.matmul %63, %64, %cst_21 {dimension_numbers = #tpu.dot_dimension_numbers<[1], [1], [0], [0], [0, 0, 1, 0], [], []>} : vector<8x8xf32>, vector<8x8xf32>, vector<8x8xf32> -> vector<8x8xf32>
    %67 = vector.broadcast %3 : vector<1x8xf32> to vector<8x8xf32>
    %68 = arith.addf %66, %67 : vector<8x8xf32>
    %cst_22 = arith.constant dense<0xFF800000> : vector<8xf32>
    %69 = vector.multi_reduction <maximumf>, %68, %cst_22 [1] : vector<8x8xf32> to vector<8xf32>
    %70 = vector.shape_cast %69 : vector<8xf32> to vector<8x1xf32>
    %71 = vector.broadcast %70 : vector<8x1xf32> to vector<8x8xf32>
    %72 = arith.subf %68, %71 : vector<8x8xf32>
    %73 = math.exp %72 : vector<8x8xf32>
    %cst_23 = arith.constant dense<0.000000e+00> : vector<8xf32>
    %74 = vector.multi_reduction <add>, %73, %cst_23 [1] : vector<8x8xf32> to vector<8xf32>
    %75 = vector.shape_cast %74 : vector<8xf32> to vector<8x1xf32>
    %76 = tpu.reciprocal %75 {approx = true} : vector<8x1xf32> -> vector<8x1xf32>
    %77 = vector.broadcast %76 : vector<8x1xf32> to vector<8x8xf32>
    %78 = arith.mulf %73, %77 : vector<8x8xf32>
    %cst_24 = arith.constant dense<0.000000e+00> : vector<8x8xf32>
    %79 = tpu.matmul %78, %65, %cst_24 {dimension_numbers = #tpu.dot_dimension_numbers<[1], [0], [0], [1], [0, 0, 1, 1], [], []>} : vector<8x8xf32>, vector<8x8xf32>, vector<8x8xf32> -> vector<8x8xf32>
    %80 = tpu.concatenate %28, %45, %62, %79 in 1 : vector<8x8xf32>, vector<8x8xf32>, vector<8x8xf32>, vector<8x8xf32> -> vector<8x32xf32>
    %c0_25 = arith.constant 0 : index
    %c0_26 = arith.constant 0 : index
    %81 = vector.load %arg5[%c0_25, %c0_26] : memref<32x32xf32, #tpu.memory_space<vmem>>, vector<32x32xf32>
    %cst_27 = arith.constant dense<0.000000e+00> : vector<8x32xf32>
    %82 = tpu.matmul %80, %81, %cst_27 {dimension_numbers = #tpu.dot_dimension_numbers<[1], [0], [0], [1], [0, 0, 1, 1], [], []>} : vector<8x32xf32>, vector<32x32xf32>, vector<8x32xf32> -> vector<8x32xf32>
    %c0_28 = arith.constant 0 : index
    %c0_29 = arith.constant 0 : index
    %83 = vector.load %arg6[%c0_28, %c0_29] : memref<1x32xf32, #tpu.memory_space<vmem>>, vector<1x32xf32>
    %84 = vector.broadcast %83 : vector<1x32xf32> to vector<8x32xf32>
    %85 = arith.addf %82, %84 : vector<8x32xf32>
    %c0_30 = arith.constant 0 : index
    %c0_31 = arith.constant 0 : index
    %c0_32 = arith.constant 0 : index
    %86 = vector.load %arg7[%c0_30, %c0_31, %c0_32] : memref<1x8x32xf32, #tpu.memory_space<vmem>>, vector<1x8x32xf32>
    %87 = vector.shape_cast %86 : vector<1x8x32xf32> to vector<8x32xf32>
    %88 = vector.shape_cast %85 : vector<8x32xf32> to vector<1x8x32xf32>
    tpu.vector_store %arg7[%c0_30, %c0_31, %c0_32], %88 {strides = array<i32>} : memref<1x8x32xf32, #tpu.memory_space<vmem>>, vector<1x8x32xf32>,
    return
  }
  func.func @transform_0(%arg0: i32) -> (i32, i32, i32) {
    %c0_i32 = arith.constant 0 : i32
    %c0_i32_0 = arith.constant 0 : i32
    %c0_i32_1 = arith.constant 0 : i32
    return %arg0, %c0_i32, %c0_i32_0 : i32, i32, i32
  }
  func.func @transform_1(%arg0: i32) -> (i32, i32, i32) {
    %c0_i32 = arith.constant 0 : i32
    %c0_i32_0 = arith.constant 0 : i32
    %c0_i32_1 = arith.constant 0 : i32
    return %arg0, %c0_i32, %c0_i32_0 : i32, i32, i32
  }
  func.func @transform_2(%arg0: i32) -> (i32, i32) {
    %c0_i32 = arith.constant 0 : i32
    %c0_i32_0 = arith.constant 0 : i32
    %c0_i32_1 = arith.constant 0 : i32
    return %c0_i32, %c0_i32_0 : i32, i32
  }
  func.func @transform_3(%arg0: i32) -> (i32, i32) {
    %c0_i32 = arith.constant 0 : i32
    %c0_i32_0 = arith.constant 0 : i32
    %c0_i32_1 = arith.constant 0 : i32
    return %c0_i32, %c0_i32_0 : i32, i32
  }
  func.func @transform_4(%arg0: i32) -> (i32, i32) {
    %c0_i32 = arith.constant 0 : i32
    %c0_i32_0 = arith.constant 0 : i32
    %c0_i32_1 = arith.constant 0 : i32
    return %c0_i32, %c0_i32_0 : i32, i32
  }
  func.func @transform_5(%arg0: i32) -> (i32, i32) {
    %c0_i32 = arith.constant 0 : i32
    %c0_i32_0 = arith.constant 0 : i32
    %c0_i32_1 = arith.constant 0 : i32
    return %c0_i32, %c0_i32_0 : i32, i32
  }
  func.func @transform_6(%arg0: i32) -> (i32, i32, i32) {
    %c0_i32 = arith.constant 0 : i32
    %c0_i32_0 = arith.constant 0 : i32
    %c0_i32_1 = arith.constant 0 : i32
    return %arg0, %c0_i32, %c0_i32_0 : i32, i32, i32
  }
}

</mosaic_0001>

<llo_original>
// kernel: tpu_custom_call.1
$region0: #{tpu_custom_call.1}
  #allocation0 [shape = 'u32[]', space=smem, size = 0x4, offset = 0x4, fixed_abs, tag = 'smem constant byte address 0x4 - core index']
  #allocation1 [shape = 'u32[72,128]{1,0:T(1,128)}', space=vmem, size = 0x9000, scoped, tag = 'internal scratch']
  %s0 = inlined_call_operand.hbm [shape: f32[2,8,32], index: 0, kind: input, shape index: {}]
  %s1 = inlined_call_operand.hbm [shape: f32[2,1,8], index: 1, kind: input, shape index: {}]
  %s2 = inlined_call_operand.hbm [shape: f32[32,96], index: 2, kind: input, shape index: {}]
  %s3 = inlined_call_operand.vmem [shape: f32[1,96], index: 3, kind: input, shape index: {}]
  %s4 = inlined_call_operand.hbm [shape: f32[32,32], index: 4, kind: input, shape index: {}]
  %s5 = inlined_call_operand.vmem [shape: f32[1,32], index: 5, kind: input, shape index: {}]
  %s6 = inlined_call_operand.hbm [shape: f32[2,8,32], index: 6, kind: output, shape index: {}]
  %s7 = sld [smem:[#allocation0]]
  $region73: #{tpu_custom_call.1} parent=0
    _
  %s9 = ssub.s32 1, %s7
  %s10 = scalar_select 0, %s9, %s7
  $region1: #{tpu_custom_call.1} parent=0
    #allocation2 [shape = 'u8[8192]{0}', space=vmem, size = 0x2000, scoped, tag = 'input window, operand 0']
    #allocation3 [shape = 's32[2]{0}', space=sflag, size = 0x8, scoped, tag = 'scoped memory for tpu_custom_call.1']
    #allocation4 [shape = 's32[2]{0}', space=sflag, size = 0x8, scoped, tag = 'scoped memory for tpu_custom_call.1']
    #allocation5 [shape = 'u8[1024]{0}', space=vmem, size = 0x400, scoped, tag = 'input window, operand 1']
    #allocation6 [shape = 's32[2]{0}', space=sflag, size = 0x8, scoped, tag = 'scoped memory for tpu_custom_call.1']
    #allocation7 [shape = 'u8[16384]{0}', space=vmem, size = 0x4000, scoped, tag = 'input window, operand 2, single buffered']
    #allocation8 [shape = 'u8[16384]{0}', space=vmem, size = 0x4000, scoped, tag = 'input window, operand 4, single buffered']
    #allocation9 [shape = 's32[1]{0}', space=sflag, size = 0x4, scoped, tag = 'scoped memory for tpu_custom_call.1']
    #allocation10 [shape = 'u8[8192]{0}', space=vmem, size = 0x2000, scoped, tag = 'output window, operand 0']
    %11 = vsyncpa [#allocation3], 0
    %s12 = scalar_lea.sflag [#allocation3], 1
    %13 = vsyncpa %s12, 0
    %14 = vsyncpa [#allocation6], 0
    %s15 = scalar_lea.sflag [#allocation6], 1
    %16 = vsyncpa %s15, 0
    %17 = vsyncpa [#allocation9], 0
    %18 = vsyncpa [#allocation4], 0
    %s19 = scalar_lea.sflag [#allocation4], 1
    %20 = vsyncpa %s19, 0
    loop: start=0, step=1, limit=4
    $region2: #{tpu_custom_call.1} parent=1 // loop_pre_header
      _
    $region3: #{tpu_custom_call.1} parent=1 // loop_header
      %s22 = sphi 0, %s26
      %p23 = scmp.ge.s32.totalorder %s22, 4
      %s32 = sphi 0, %s34
      %s35 = sphi 0, %s32
      %s36 = sphi 0, %s35
      %s52 = sphi 0, %s36
      %s58 = sphi 0, %s60
      %s61 = sphi 0, %s58
      %s62 = sphi 0, %s61
      %s78 = sphi 0, %s62
      %s82 = sphi 0, %s82
      %s84 = sphi 0, %s82
      %s85 = sphi 0, %s84
      %s99 = sphi 0, %s85
      %s103 = sphi 0, %s103
      %s105 = sphi 0, %s103
      %s106 = sphi 0, %s105
      %s120 = sphi 0, %s106
      %s124 = sphi 0, %s124
      %s126 = sphi 0, %s124
      %s127 = sphi 0, %s126
      %s141 = sphi 0, %s127
      %s145 = sphi 0, %s145
      %s147 = sphi 0, %s145
      %s148 = sphi 0, %s147
      %s162 = sphi 0, %s148
      %s168 = sphi 0, %s170
      %s171 = sphi 0, %s168
      %s172 = sphi 0, %s171
      %s188 = sphi 0, %s172
    $region4: #{tpu_custom_call.1} parent=1 // loop_header_branch
      %25 = sbr.rel (%p23) target = $region8
    $region5: #{tpu_custom_call.1} parent=1 // loop_body
      %s27 = ssub.s32 %s22, 1
      %s28 = ssub.s32 %s22, 2
      %s29 = sadd.s32 %s22, 1
      %s30 = ssub.s32 %s22, %s29
      %p31 = scmp.eq.s32.totalorder %s30, 0
      %s33 = sadd.s32 %s32, 1
      %s34 = scalar_select %p31, %s32, %s33
      %p37 = pneg %p31
      %p38 = scmp.eq.s32.totalorder %s22, 1
      %p39 = por %p37, %p38
      %p40 = scmp.ne.s32.totalorder %s32, %s35
      %p41 = scmp.eq.s32.totalorder %s22, 0
      %p42 = por %p40, %p41
      %p43 = scmp.ne.s32.totalorder %s32, %s35
      %p44 = scmp.eq.s32.totalorder %s27, 1
      %p45 = por %p43, %p44
      %p46 = scmp.ne.s32.totalorder %s35, %s36
      %p47 = scmp.eq.s32.totalorder %s27, 0
      %p48 = por %p46, %p47
      %p49 = scmp.ne.s32.totalorder %s35, %s36
      %p50 = scmp.eq.s32.totalorder %s28, 1
      %p51 = por %p49, %p50
      %p53 = scmp.ne.s32.totalorder %s36, %s52
      %p54 = scmp.eq.s32.totalorder %s28, 0
      %p55 = por %p53, %p54
      %s56 = ssub.s32 %s22, %s29
      %p57 = scmp.eq.s32.totalorder %s56, 0
      %s59 = sadd.s32 %s58, 1
      %s60 = scalar_select %p57, %s58, %s59
      %p63 = pneg %p57
      %p64 = scmp.eq.s32.totalorder %s22, 1
      %p65 = por %p63, %p64
      %p66 = scmp.ne.s32.totalorder %s58, %s61
      %p67 = scmp.eq.s32.totalorder %s22, 0
      %p68 = por %p66, %p67
      %p69 = scmp.ne.s32.totalorder %s58, %s61
      %p70 = scmp.eq.s32.totalorder %s27, 1
      %p71 = por %p69, %p70
      %p72 = scmp.ne.s32.totalorder %s61, %s62
      %p73 = scmp.eq.s32.totalorder %s27, 0
      %p74 = por %p72, %p73
      %p75 = scmp.ne.s32.totalorder %s61, %s62
      %p76 = scmp.eq.s32.totalorder %s28, 1
      %p77 = por %p75, %p76
      %p79 = scmp.ne.s32.totalorder %s62, %s78
      %p80 = scmp.eq.s32.totalorder %s28, 0
      %p81 = por %p79, %p80
      %s83 = sadd.s32 %s82, 1
      %p86 = scmp.eq.s32.totalorder %s22, 1
      %p87 = scmp.ne.s32.totalorder %s82, %s84
      %p88 = scmp.eq.s32.totalorder %s22, 0
      %p89 = por %p87, %p88
      %p90 = scmp.ne.s32.totalorder %s82, %s84
      %p91 = scmp.eq.s32.totalorder %s27, 1
      %p92 = por %p90, %p91
      %p93 = scmp.ne.s32.totalorder %s84, %s85
      %p94 = scmp.eq.s32.totalorder %s27, 0
      %p95 = por %p93, %p94
      %p96 = scmp.ne.s32.totalorder %s84, %s85
      %p97 = scmp.eq.s32.totalorder %s28, 1
      %p98 = por %p96, %p97
      %p100 = scmp.ne.s32.totalorder %s85, %s99
      %p101 = scmp.eq.s32.totalorder %s28, 0
      %p102 = por %p100, %p101
      %s104 = sadd.s32 %s103, 1
      %p107 = scmp.eq.s32.totalorder %s22, 1
      %p108 = scmp.ne.s32.totalorder %s103, %s105
      %p109 = scmp.eq.s32.totalorder %s22, 0
      %p110 = por %p108, %p109
      %p111 = scmp.ne.s32.totalorder %s103, %s105
      %p112 = scmp.eq.s32.totalorder %s27, 1
      %p113 = por %p111, %p112
      %p114 = scmp.ne.s32.totalorder %s105, %s106
      %p115 = scmp.eq.s32.totalorder %s27, 0
      %p116 = por %p114, %p115
      %p117 = scmp.ne.s32.totalorder %s105, %s106
      %p118 = scmp.eq.s32.totalorder %s28, 1
      %p119 = por %p117, %p118
      %p121 = scmp.ne.s32.totalorder %s106, %s120
      %p122 = scmp.eq.s32.totalorder %s28, 0
      %p123 = por %p121, %p122
      %s125 = sadd.s32 %s124, 1
      %p128 = scmp.eq.s32.totalorder %s22, 1
      %p129 = scmp.ne.s32.totalorder %s124, %s126
      %p130 = scmp.eq.s32.totalorder %s22, 0
      %p131 = por %p129, %p130
      %p132 = scmp.ne.s32.totalorder %s124, %s126
      %p133 = scmp.eq.s32.totalorder %s27, 1
      %p134 = por %p132, %p133
      %p135 = scmp.ne.s32.totalorder %s126, %s127
      %p136 = scmp.eq.s32.totalorder %s27, 0
      %p137 = por %p135, %p136
      %p138 = scmp.ne.s32.totalorder %s126, %s127
      %p139 = scmp.eq.s32.totalorder %s28, 1
      %p140 = por %p138, %p139
      %p142 = scmp.ne.s32.totalorder %s127, %s141
      %p143 = scmp.eq.s32.totalorder %s28, 0
      %p144 = por %p142, %p143
      %s146 = sadd.s32 %s145, 1
      %p149 = scmp.eq.s32.totalorder %s22, 1
      %p150 = scmp.ne.s32.totalorder %s145, %s147
      %p151 = scmp.eq.s32.totalorder %s22, 0
      %p152 = por %p150, %p151
      %p153 = scmp.ne.s32.totalorder %s145, %s147
      %p154 = scmp.eq.s32.totalorder %s27, 1
      %p155 = por %p153, %p154
      %p156 = scmp.ne.s32.totalorder %s147, %s148
      %p157 = scmp.eq.s32.totalorder %s27, 0
      %p158 = por %p156, %p157
      %p159 = scmp.ne.s32.totalorder %s147, %s148
      %p160 = scmp.eq.s32.totalorder %s28, 1
      %p161 = por %p159, %p160
      %p163 = scmp.ne.s32.totalorder %s148, %s162
      %p164 = scmp.eq.s32.totalorder %s28, 0
      %p165 = por %p163, %p164
      %s166 = ssub.s32 %s22, %s29
      %p167 = scmp.eq.s32.totalorder %s166, 0
      %s169 = sadd.s32 %s168, 1
      %s170 = scalar_select %p167, %s168, %s169
      %p173 = pneg %p167
      %p174 = scmp.eq.s32.totalorder %s22, 1
      %p175 = por %p173, %p174
      %p176 = scmp.ne.s32.totalorder %s168, %s171
      %p177 = scmp.eq.s32.totalorder %s22, 0
      %p178 = por %p176, %p177
      %p179 = scmp.ne.s32.totalorder %s168, %s171
      %p180 = scmp.eq.s32.totalorder %s27, 1
      %p181 = por %p179, %p180
      %p182 = scmp.ne.s32.totalorder %s171, %s172
      %p183 = scmp.eq.s32.totalorder %s27, 0
      %p184 = por %p182, %p183
      %p185 = scmp.ne.s32.totalorder %s171, %s172
      %p186 = scmp.eq.s32.totalorder %s28, 1
      %p187 = por %p185, %p186
      %p189 = scmp.ne.s32.totalorder %s172, %s188
      %p190 = scmp.eq.s32.totalorder %s28, 0
      %p191 = por %p189, %p190
      %p192 = scmp.le.s32.totalorder 1, %s22
      %p193 = scmp.lt.s32.totalorder %s22, 3
      %p194 = pnand %p192, %p193
      %p195 = pneg %p194
      // Predicated region
      $region9: #{tpu_custom_call.1} parent=5 // pred_check
        _
      $region10: #{tpu_custom_call.1} parent=5 // pred_check_branch
        %197 = sbr.rel (%p194) target = $region12
      $region11: #{tpu_custom_call.1} parent=5 // pred_region
        %s198 = ssub.s32 %s22, 1
        // Predicated region
        $region13: #{tpu_custom_call.1} parent=11 // pred_check
          %p199 = pneg %p95
        $region14: #{tpu_custom_call.1} parent=11 // pred_check_branch
          %201 = sbr.rel (%p199) target = $region16
        $region15: #{tpu_custom_call.1} parent=11 // pred_region
          %203 = vsyncadd [#allocation6], 0
          %s204 = sshll.u32 %s2, 4
          %s205 = int_to_ptr.hbm [resolvable:$true] %s204
          %s206 = sshll.u32 [#allocation7], 4
          %s207 = int_to_ptr.vmem [resolvable:$true] %s206
          %212 = dma.hbm_to_vmem [thread:$0]  %s205, 512, %s207, [#allocation6], 128, 128, 8
        $region16: #{tpu_custom_call.1} parent=11 // pred_fallthru
          _
        // Predicated region
        $region17: #{tpu_custom_call.1} parent=11 // pred_check
          %p213 = pneg %p116
        $region18: #{tpu_custom_call.1} parent=11 // pred_check_branch
          %215 = sbr.rel (%p213) target = $region20
        $region19: #{tpu_custom_call.1} parent=11 // pred_region
          _
        $region20: #{tpu_custom_call.1} parent=11 // pred_fallthru
          _
        // Predicated region
        $region21: #{tpu_custom_call.1} parent=11 // pred_check
          %p216 = pneg %p137
        $region22: #{tpu_custom_call.1} parent=11 // pred_check_branch
          %218 = sbr.rel (%p216) target = $region24
        $region23: #{tpu_custom_call.1} parent=11 // pred_region
          %220 = vsyncadd [#allocation9], 0
          %s221 = sshll.u32 %s4, 4
          %s222 = int_to_ptr.hbm [resolvable:$true] %s221
          %s223 = sshll.u32 [#allocation8], 4
          %s224 = int_to_ptr.vmem [resolvable:$true] %s223
          %229 = dma.hbm_to_vmem [thread:$0]  %s222, 512, %s224, [#allocation9], 128, 128, 8
        $region24: #{tpu_custom_call.1} parent=11 // pred_fallthru
          _
        // Predicated region
        $region25: #{tpu_custom_call.1} parent=11 // pred_check
          %p230 = pneg %p158
        $region26: #{tpu_custom_call.1} parent=11 // pred_check_branch
          %232 = sbr.rel (%p230) target = $region28
        $region27: #{tpu_custom_call.1} parent=11 // pred_region
          _
        $region28: #{tpu_custom_call.1} parent=11 // pred_fallthru
          _
      $region12: #{tpu_custom_call.1} parent=5 // pred_fallthru
        _
      %p233 = scmp.lt.s32.totalorder %s22, 2
      // Predicated region
      $region29: #{tpu_custom_call.1} parent=5 // pred_check
        %p234 = pneg %p233
      $region30: #{tpu_custom_call.1} parent=5 // pred_check_branch
        %236 = sbr.rel (%p234) target = $region32
      $region31: #{tpu_custom_call.1} parent=5 // pred_region
        // Predicated region
        $region33: #{tpu_custom_call.1} parent=31 // pred_check
          %p237 = pneg %p42
        $region34: #{tpu_custom_call.1} parent=31 // pred_check_branch
          %239 = sbr.rel (%p237) target = $region36
        $region35: #{tpu_custom_call.1} parent=31 // pred_region
          %s240 = sand.u32 %s32, 1
          %s241 = scalar_lea.sflag [#allocation3], %s240
          %s242 = sand.u32 %s32, 1
          %s243 = smul.addr %s242, 8
          %s244 = scalar_lea.vmem [#allocation2], %s243
          %246 = vsyncadd %s241, 0
          %s247 = smul.addr %s22, 8
          %s248 = scalar_lea.hbm %s0, %s247
          %s250 = sshll.u32 %s248, 4
          %s251 = int_to_ptr.hbm [resolvable:$true] %s250
          %s252 = sshll.u32 %s244, 4
          %s253 = int_to_ptr.vmem [resolvable:$true] %s252
          %255 = dma.hbm_to_vmem [thread:$0]  %s251, 128, %s253, %s241
        $region36: #{tpu_custom_call.1} parent=31 // pred_fallthru
          _
        // Predicated region
        $region37: #{tpu_custom_call.1} parent=31 // pred_check
          %p256 = pneg %p68
        $region38: #{tpu_custom_call.1} parent=31 // pred_check_branch
          %258 = sbr.rel (%p256) target = $region40
        $region39: #{tpu_custom_call.1} parent=31 // pred_region
          %s259 = sand.u32 %s22, 1
          %s260 = scalar_lea.sflag [#allocation6], %s259
          %s261 = sand.u32 %s58, 1
          %s262 = scalar_lea.vmem [#allocation5], %s261
          %264 = vsyncadd %s260, 0
          %s265 = scalar_lea.hbm %s1, %s22
          %s267 = sshll.u32 %s265, 4
          %s268 = int_to_ptr.hbm [resolvable:$true] %s267
          %s269 = sshll.u32 %s262, 4
          %s270 = int_to_ptr.vmem [resolvable:$true] %s269
          %272 = dma.hbm_to_vmem [thread:$0]  %s268, 16, %s270, %s260
        $region40: #{tpu_custom_call.1} parent=31 // pred_fallthru
          _
      $region32: #{tpu_custom_call.1} parent=5 // pred_fallthru
        _
      %p273 = scmp.le.s32.totalorder 1, %s22
      %p274 = scmp.lt.s32.totalorder %s22, 3
      %p275 = pnand %p273, %p274
      %p276 = pneg %p275
      // Predicated region
      $region41: #{tpu_custom_call.1} parent=5 // pred_check
        _
      $region42: #{tpu_custom_call.1} parent=5 // pred_check_branch
        %278 = sbr.rel (%p275) target = $region44
      $region43: #{tpu_custom_call.1} parent=5 // pred_region
        %s279 = ssub.s32 %s22, 1
        %s280 = sand.u32 %s35, 1
        %s281 = scalar_lea.sflag [#allocation3], %s280
        %s282 = sand.u32 %s35, 1
        %s283 = smul.addr %s282, 8
        %s284 = scalar_lea.vmem [#allocation2], %s283
        // Predicated region
        $region45: #{tpu_custom_call.1} parent=43 // pred_check
          %p285 = pneg %p48
        $region46: #{tpu_custom_call.1} parent=43 // pred_check_branch
          %287 = sbr.rel (%p285) target = $region48
        $region47: #{tpu_custom_call.1} parent=43 // pred_region
          %289 = dma.done %s281, 128
        $region48: #{tpu_custom_call.1} parent=43 // pred_fallthru
          _
        %s290 = sand.u32 %s27, 1
        %s291 = scalar_lea.sflag [#allocation6], %s290
        %s292 = sand.u32 %s61, 1
        %s293 = scalar_lea.vmem [#allocation5], %s292
        // Predicated region
        $region49: #{tpu_custom_call.1} parent=43 // pred_check
          %p294 = pneg %p74
        $region50: #{tpu_custom_call.1} parent=43 // pred_check_branch
          %296 = sbr.rel (%p294) target = $region52
        $region51: #{tpu_custom_call.1} parent=43 // pred_region
          %298 = dma.done %s291, 16
        $region52: #{tpu_custom_call.1} parent=43 // pred_fallthru
          _
        // Predicated region
        $region53: #{tpu_custom_call.1} parent=43 // pred_check
          %p299 = pneg %p95
        $region54: #{tpu_custom_call.1} parent=43 // pred_check_branch
          %301 = sbr.rel (%p299) target = $region56
        $region55: #{tpu_custom_call.1} parent=43 // pred_region
          %303 = dma.done [#allocation6], 512
        $region56: #{tpu_custom_call.1} parent=43 // pred_fallthru
          _
        // Predicated region
        $region57: #{tpu_custom_call.1} parent=43 // pred_check
          %p304 = pneg %p137
        $region58: #{tpu_custom_call.1} parent=43 // pred_check_branch
          %306 = sbr.rel (%p304) target = $region60
        $region59: #{tpu_custom_call.1} parent=43 // pred_region
          %308 = dma.done [#allocation9], 512
        $region60: #{tpu_custom_call.1} parent=43 // pred_fallthru
          _
        %s309 = sand.u32 %s35, 1
        %s310 = scalar_lea.sflag [#allocation3], %s309
        %s311 = sand.u32 %s35, 1
        %s312 = smul.addr %s311, 8
        %s313 = scalar_lea.vmem [#allocation2], %s312
        %p314 = pneg %p48
        %p315 = pneg %p45
        %s316 = sand.u32 %s27, 1
        %s317 = scalar_lea.sflag [#allocation6], %s316
        %s318 = sand.u32 %s61, 1
        %s319 = scalar_lea.vmem [#allocation5], %s318
        %p320 = pneg %p74
        %p321 = pneg %p71
        %p322 = pneg %p95
        %p323 = pneg %p92
        %p324 = pneg %p116
        %p325 = pneg %p113
        %p326 = pneg %p137
        %p327 = pneg %p134
        %p328 = pneg %p158
        %p329 = pneg %p155
        %p330 = pneg %p184
        %p331 = pneg %p181
        %s332 = sand.u32 %s171, 1
        %s333 = scalar_lea.sflag [#allocation4], %s332
        %s334 = sand.u32 %s171, 1
        %s335 = smul.addr %s334, 8
        %s336 = scalar_lea.vmem [#allocation10], %s335
        %v337 = vld [vmem:[%s284] sm:$0xff]
        %v338 = vld [vmem:[%s293] sm:$0x1]
        %v339 = vld [vmem:[#allocation7] sm:$0xff]
        %v340 = vld [vmem:[#allocation7 + $0x8] sm:$0xff]
        %v341 = vld [vmem:[#allocation7 + $0x10] sm:$0xff]
        %v342 = vld [vmem:[#allocation7 + $0x18] sm:$0xff]
        %v343 = vld [vmem:[%s3] sm:$0x1]
        %v345 = vperm.slane %v343, 0
        %vm347 = vcmask 261120
        %v349 = vsel %vm347, %v337, 0
        %351 = vmatpush.msra.mxu0 0.0
        %352 = vmatpush.msra.mxu0 0.0
        %353 = vmatpush.msra.mxu0 0.0
        %354 = vmatpush.msra.mxu0 0.0
        %355 = vmatpush.msra.mxu0 0.0
        %356 = vmatpush.msra.mxu0 0.0
        %357 = vmatpush.msra.mxu0 0.0
        %358 = vmatpush.msra.mxu0 0.0
        %359 = vmatpush.msra.mxu0 0.0
        %360 = vmatpush.msra.mxu0 0.0
        %361 = vmatpush.msra.mxu0 0.0
        %362 = vmatpush.msra.mxu0 0.0
        %363 = vmatpush.msra.mxu0 %v342
        %364 = vmatpush.msra.mxu0 %v341
        %365 = vmatpush.msra.mxu0 %v340
        %366 = vmatpush.msra.mxu0 %v339
        %367 = vmatmul.f32.gmra.mxu0 %v349
        %v368 = vpop.f32.mrf.mxu0
        %v369 = vadd.f32 %v345, %v368
        %370 = vdwg.mxu0
        %v372 = vperm.slane %v338, 0
        %375 = vrot.lane.b32.xlu0 %v369, 96
        %v376 = vpop.permute.xlu0 %375
        %vm377 = vcmask 64512
        %v378 = vsel %vm377, %v369, 0
        %v380 = vsel %vm377, %v376, 0
        %382 = vmatpush.xpose.msra.mxu0 0.0
        %383 = vmatpush.xpose.msra.mxu0 0.0
        %384 = vmatpush.xpose.msra.mxu0 0.0
        %385 = vmatpush.xpose.msra.mxu0 0.0
        %386 = vmatpush.xpose.msra.mxu0 0.0
        %387 = vmatpush.xpose.msra.mxu0 0.0
        %388 = vmatpush.xpose.msra.mxu0 0.0
        %389 = vmatpush.xpose.msra.mxu0 0.0
        %390 = vmatpush.xpose.msra.mxu0 0.0
        %391 = vmatpush.xpose.msra.mxu0 0.0
        %392 = vmatpush.xpose.msra.mxu0 0.0
        %393 = vmatpush.xpose.msra.mxu0 0.0
        %394 = vmatpush.xpose.msra.mxu0 0.0
        %395 = vmatpush.xpose.msra.mxu0 0.0
        %396 = vmatpush.xpose.msra.mxu0 0.0
        %397 = vmatpush.xpose.msra.mxu0 %v380
        %398 = vmatmul.f32.gmra.mxu0 %v378
        %v399 = vpop.f32.mrf.mxu0
        %v400 = vadd.f32 %v372, %v399
        %401 = vdwg.mxu0
        %v402 = vsel %vm377, %v400, -inf
        %403 = vmax.xlane.f32.xlu0 %v402
        %v404 = vpop.xlane.xlu0 %403
        %v405 = vsub.f32 %v400, %v404
        %v406 = vmul.f32 %v405, 1.442695
        %v407 = vpow.pop %v406
        %v408 = vsel %vm377, %v407, 0.0
        %409 = vadd.xlane.f32.xlu0 %v408
        %v410 = vpop.xlane.xlu0 %409
        %v411 = vrcp.pop %v410
        %v412 = vmul.f32 %v407, %v411
        %413 = vrot.lane.b32.xlu0 %v369, 64
        %v414 = vpop.permute.xlu0 %413
        %v417 = vsel %vm377, %v412, 0
        %419 = vmatpush.msra.mxu0 0.0
        %420 = vmatpush.msra.mxu0 0.0
        %421 = vmatpush.msra.mxu0 0.0
        %422 = vmatpush.msra.mxu0 0.0
        %423 = vmatpush.msra.mxu0 0.0
        %424 = vmatpush.msra.mxu0 0.0
        %425 = vmatpush.msra.mxu0 0.0
        %426 = vmatpush.msra.mxu0 0.0
        %427 = vmatpush.msra.mxu0 0.0
        %428 = vmatpush.msra.mxu0 0.0
        %429 = vmatpush.msra.mxu0 0.0
        %430 = vmatpush.msra.mxu0 0.0
        %431 = vmatpush.msra.mxu0 0.0
        %432 = vmatpush.msra.mxu0 0.0
        %433 = vmatpush.msra.mxu0 0.0
        %434 = vmatpush.msra.mxu0 %v414
        %435 = vmatmul.f32.gmra.mxu0 %v417
        %v436 = vpop.f32.mrf.mxu0
        %v437 = vadd.f32 0.0, %v436
        %438 = vdwg.mxu0
        %439 = vrot.lane.b32.xlu0 %v369, 120
        %v440 = vpop.permute.xlu0 %439
        %441 = vrot.lane.b32.xlu0 %v369, 88
        %v442 = vpop.permute.xlu0 %441
        %v443 = vsel %vm377, %v440, 0
        %v445 = vsel %vm377, %v442, 0
        %447 = vmatpush.xpose.msra.mxu0 0.0
        %448 = vmatpush.xpose.msra.mxu0 0.0
        %449 = vmatpush.xpose.msra.mxu0 0.0
        %450 = vmatpush.xpose.msra.mxu0 0.0
        %451 = vmatpush.xpose.msra.mxu0 0.0
        %452 = vmatpush.xpose.msra.mxu0 0.0
        %453 = vmatpush.xpose.msra.mxu0 0.0
        %454 = vmatpush.xpose.msra.mxu0 0.0
        %455 = vmatpush.xpose.msra.mxu0 0.0
        %456 = vmatpush.xpose.msra.mxu0 0.0
        %457 = vmatpush.xpose.msra.mxu0 0.0
        %458 = vmatpush.xpose.msra.mxu0 0.0
        %459 = vmatpush.xpose.msra.mxu0 0.0
        %460 = vmatpush.xpose.msra.mxu0 0.0
        %461 = vmatpush.xpose.msra.mxu0 0.0
        %462 = vmatpush.xpose.msra.mxu0 %v445
        %463 = vmatmul.f32.gmra.mxu0 %v443
        %v464 = vpop.f32.mrf.mxu0
        %v465 = vadd.f32 %v372, %v464
        %466 = vdwg.mxu0
        %v467 = vsel %vm377, %v465, -inf
        %468 = vmax.xlane.f32.xlu0 %v467
        %v469 = vpop.xlane.xlu0 %468
        %v470 = vsub.f32 %v465, %v469
        %v471 = vmul.f32 %v470, 1.442695
        %v472 = vpow.pop %v471
        %v473 = vsel %vm377, %v472, 0.0
        %474 = vadd.xlane.f32.xlu0 %v473
        %v475 = vpop.xlane.xlu0 %474
        %v476 = vrcp.pop %v475
        %v477 = vmul.f32 %v472, %v476
        %478 = vrot.lane.b32.xlu0 %v369, 56
        %v479 = vpop.permute.xlu0 %478
        %v482 = vsel %vm377, %v477, 0
        %484 = vmatpush.msra.mxu0 0.0
        %485 = vmatpush.msra.mxu0 0.0
        %486 = vmatpush.msra.mxu0 0.0
        %487 = vmatpush.msra.mxu0 0.0
        %488 = vmatpush.msra.mxu0 0.0
        %489 = vmatpush.msra.mxu0 0.0
        %490 = vmatpush.msra.mxu0 0.0
        %491 = vmatpush.msra.mxu0 0.0
        %492 = vmatpush.msra.mxu0 0.0
        %493 = vmatpush.msra.mxu0 0.0
        %494 = vmatpush.msra.mxu0 0.0
        %495 = vmatpush.msra.mxu0 0.0
        %496 = vmatpush.msra.mxu0 0.0
        %497 = vmatpush.msra.mxu0 0.0
        %498 = vmatpush.msra.mxu0 0.0
        %499 = vmatpush.msra.mxu0 %v479
        %500 = vmatmul.f32.gmra.mxu0 %v482
        %v501 = vpop.f32.mrf.mxu0
        %v502 = vadd.f32 0.0, %v501
        %503 = vdwg.mxu0
        %504 = vrot.lane.b32.xlu0 %v369, 112
        %v505 = vpop.permute.xlu0 %504
        %506 = vrot.lane.b32.xlu0 %v369, 80
        %v507 = vpop.permute.xlu0 %506
        %v508 = vsel %vm377, %v505, 0
        %v510 = vsel %vm377, %v507, 0
        %512 = vmatpush.xpose.msra.mxu0 0.0
        %513 = vmatpush.xpose.msra.mxu0 0.0
        %514 = vmatpush.xpose.msra.mxu0 0.0
        %515 = vmatpush.xpose.msra.mxu0 0.0
        %516 = vmatpush.xpose.msra.mxu0 0.0
        %517 = vmatpush.xpose.msra.mxu0 0.0
        %518 = vmatpush.xpose.msra.mxu0 0.0
        %519 = vmatpush.xpose.msra.mxu0 0.0
        %520 = vmatpush.xpose.msra.mxu0 0.0
        %521 = vmatpush.xpose.msra.mxu0 0.0
        %522 = vmatpush.xpose.msra.mxu0 0.0
        %523 = vmatpush.xpose.msra.mxu0 0.0
        %524 = vmatpush.xpose.msra.mxu0 0.0
        %525 = vmatpush.xpose.msra.mxu0 0.0
        %526 = vmatpush.xpose.msra.mxu0 0.0
        %527 = vmatpush.xpose.msra.mxu0 %v510
        %528 = vmatmul.f32.gmra.mxu0 %v508
        %v529 = vpop.f32.mrf.mxu0
        %v530 = vadd.f32 %v372, %v529
        %531 = vdwg.mxu0
        %v532 = vsel %vm377, %v530, -inf
        %533 = vmax.xlane.f32.xlu0 %v532
        %v534 = vpop.xlane.xlu0 %533
        %v535 = vsub.f32 %v530, %v534
        %v536 = vmul.f32 %v535, 1.442695
        %v537 = vpow.pop %v536
        %v538 = vsel %vm377, %v537, 0.0
        %539 = vadd.xlane.f32.xlu0 %v538
        %v540 = vpop.xlane.xlu0 %539
        %v541 = vrcp.pop %v540
        %v542 = vmul.f32 %v537, %v541
        %543 = vrot.lane.b32.xlu0 %v369, 48
        %v544 = vpop.permute.xlu0 %543
        %v547 = vsel %vm377, %v542, 0
        %549 = vmatpush.msra.mxu0 0.0
        %550 = vmatpush.msra.mxu0 0.0
        %551 = vmatpush.msra.mxu0 0.0
        %552 = vmatpush.msra.mxu0 0.0
        %553 = vmatpush.msra.mxu0 0.0
        %554 = vmatpush.msra.mxu0 0.0
        %555 = vmatpush.msra.mxu0 0.0
        %556 = vmatpush.msra.mxu0 0.0
        %557 = vmatpush.msra.mxu0 0.0
        %558 = vmatpush.msra.mxu0 0.0
        %559 = vmatpush.msra.mxu0 0.0
        %560 = vmatpush.msra.mxu0 0.0
        %561 = vmatpush.msra.mxu0 0.0
        %562 = vmatpush.msra.mxu0 0.0
        %563 = vmatpush.msra.mxu0 0.0
        %564 = vmatpush.msra.mxu0 %v544
        %565 = vmatmul.f32.gmra.mxu0 %v547
        %v566 = vpop.f32.mrf.mxu0
        %v567 = vadd.f32 0.0, %v566
        %568 = vdwg.mxu0
        %569 = vrot.lane.b32.xlu0 %v369, 104
        %v570 = vpop.permute.xlu0 %569
        %571 = vrot.lane.b32.xlu0 %v369, 72
        %v572 = vpop.permute.xlu0 %571
        %v573 = vsel %vm377, %v570, 0
        %v575 = vsel %vm377, %v572, 0
        %577 = vmatpush.xpose.msra.mxu0 0.0
        %578 = vmatpush.xpose.msra.mxu0 0.0
        %579 = vmatpush.xpose.msra.mxu0 0.0
        %580 = vmatpush.xpose.msra.mxu0 0.0
        %581 = vmatpush.xpose.msra.mxu0 0.0
        %582 = vmatpush.xpose.msra.mxu0 0.0
        %583 = vmatpush.xpose.msra.mxu0 0.0
        %584 = vmatpush.xpose.msra.mxu0 0.0
        %585 = vmatpush.xpose.msra.mxu0 0.0
        %586 = vmatpush.xpose.msra.mxu0 0.0
        %587 = vmatpush.xpose.msra.mxu0 0.0
        %588 = vmatpush.xpose.msra.mxu0 0.0
        %589 = vmatpush.xpose.msra.mxu0 0.0
        %590 = vmatpush.xpose.msra.mxu0 0.0
        %591 = vmatpush.xpose.msra.mxu0 0.0
        %592 = vmatpush.xpose.msra.mxu0 %v575
        %593 = vmatmul.f32.gmra.mxu0 %v573
        %v594 = vpop.f32.mrf.mxu0
        %v595 = vadd.f32 %v372, %v594
        %596 = vdwg.mxu0
        %v597 = vsel %vm377, %v595, -inf
        %598 = vmax.xlane.f32.xlu0 %v597
        %v599 = vpop.xlane.xlu0 %598
        %v600 = vsub.f32 %v595, %v599
        %v601 = vmul.f32 %v600, 1.442695
        %v602 = vpow.pop %v601
        %v603 = vsel %vm377, %v602, 0.0
        %604 = vadd.xlane.f32.xlu0 %v603
        %v605 = vpop.xlane.xlu0 %604
        %v606 = vrcp.pop %v605
        %v607 = vmul.f32 %v602, %v606
        %608 = vrot.lane.b32.xlu0 %v369, 40
        %v609 = vpop.permute.xlu0 %608
        %v612 = vsel %vm377, %v607, 0
        %614 = vmatpush.msra.mxu0 0.0
        %615 = vmatpush.msra.mxu0 0.0
        %616 = vmatpush.msra.mxu0 0.0
        %617 = vmatpush.msra.mxu0 0.0
        %618 = vmatpush.msra.mxu0 0.0
        %619 = vmatpush.msra.mxu0 0.0
        %620 = vmatpush.msra.mxu0 0.0
        %621 = vmatpush.msra.mxu0 0.0
        %622 = vmatpush.msra.mxu0 0.0
        %623 = vmatpush.msra.mxu0 0.0
        %624 = vmatpush.msra.mxu0 0.0
        %625 = vmatpush.msra.mxu0 0.0
        %626 = vmatpush.msra.mxu0 0.0
        %627 = vmatpush.msra.mxu0 0.0
        %628 = vmatpush.msra.mxu0 0.0
        %629 = vmatpush.msra.mxu0 %v609
        %630 = vmatmul.f32.gmra.mxu0 %v612
        %v631 = vpop.f32.mrf.mxu0
        %v632 = vadd.f32 0.0, %v631
        %633 = vdwg.mxu0
        %635 = vrot.lane.b32.xlu0 %v502, 8
        %v636 = vpop.permute.xlu0 %635
        %639 = vrot.lane.b32.xlu0 %v567, 16
        %v640 = vpop.permute.xlu0 %639
        %643 = vrot.lane.b32.xlu0 %v632, 24
        %v644 = vpop.permute.xlu0 %643
        %v646 = vsel %vm377, %v437, %v636
        %vm647 = vcmask 130048
        %v648 = vsel %vm647, %v646, %v640
        %vm649 = vcmask 195584
        %v650 = vsel %vm649, %v648, %v644
        %v651 = vld [vmem:[#allocation8] sm:$0xff]
        %v652 = vld [vmem:[#allocation8 + $0x8] sm:$0xff]
        %v653 = vld [vmem:[#allocation8 + $0x10] sm:$0xff]
        %v654 = vld [vmem:[#allocation8 + $0x18] sm:$0xff]
        %v655 = vld [vmem:[%s5] sm:$0x1]
        %v657 = vperm.slane %v655, 0
        %v660 = vsel %vm347, %v650, 0
        %662 = vmatpush.msra.mxu0 0.0
        %663 = vmatpush.msra.mxu0 0.0
        %664 = vmatpush.msra.mxu0 0.0
        %665 = vmatpush.msra.mxu0 0.0
        %666 = vmatpush.msra.mxu0 0.0
        %667 = vmatpush.msra.mxu0 0.0
        %668 = vmatpush.msra.mxu0 0.0
        %669 = vmatpush.msra.mxu0 0.0
        %670 = vmatpush.msra.mxu0 0.0
        %671 = vmatpush.msra.mxu0 0.0
        %672 = vmatpush.msra.mxu0 0.0
        %673 = vmatpush.msra.mxu0 0.0
        %674 = vmatpush.msra.mxu0 %v654
        %675 = vmatpush.msra.mxu0 %v653
        %676 = vmatpush.msra.mxu0 %v652
        %677 = vmatpush.msra.mxu0 %v651
        %678 = vmatmul.f32.gmra.mxu0 %v660
        %v679 = vpop.f32.mrf.mxu0
        %v680 = vadd.f32 %v657, %v679
        %681 = vdwg.mxu0
        %682 = vst.msk [vmem:[%s336] sm:$0xff] %vm347, %v680
        %s683 = sand.u32 %s171, 1
        %s684 = scalar_lea.sflag [#allocation4], %s683
        %s685 = sand.u32 %s171, 1
        %s686 = smul.addr %s685, 8
        %s687 = scalar_lea.vmem [#allocation10], %s686
        // Predicated region
        $region61: #{tpu_custom_call.1} parent=43 // pred_check
          %p688 = pneg %p181
        $region62: #{tpu_custom_call.1} parent=43 // pred_check_branch
          %690 = sbr.rel (%p688) target = $region64
        $region63: #{tpu_custom_call.1} parent=43 // pred_region
          %692 = vsyncadd %s684, 0
          %s693 = smul.addr %s27, 8
          %s694 = scalar_lea.hbm %s6, %s693
          %s696 = sshll.u32 %s687, 4
          %s697 = int_to_ptr.vmem [resolvable:$true] %s696
          %s698 = sshll.u32 %s694, 4
          %s699 = int_to_ptr.hbm [resolvable:$true] %s698
          %701 = dma.vmem_to_hbm [thread:$0]  %s697, 128, %s699, %s684
        $region64: #{tpu_custom_call.1} parent=43 // pred_fallthru
          _
      $region44: #{tpu_custom_call.1} parent=5 // pred_fallthru
        _
      %p702 = scmp.le.s32.totalorder 2, %s22
      // Predicated region
      $region65: #{tpu_custom_call.1} parent=5 // pred_check
        %p703 = pneg %p702
      $region66: #{tpu_custom_call.1} parent=5 // pred_check_branch
        %705 = sbr.rel (%p703) target = $region68
      $region67: #{tpu_custom_call.1} parent=5 // pred_region
        %s706 = ssub.s32 %s22, 2
        // Predicated region
        $region69: #{tpu_custom_call.1} parent=67 // pred_check
          %p707 = pneg %p187
        $region70: #{tpu_custom_call.1} parent=67 // pred_check_branch
          %709 = sbr.rel (%p707) target = $region72
        $region71: #{tpu_custom_call.1} parent=67 // pred_region
          %s710 = sand.u32 %s172, 1
          %s711 = scalar_lea.sflag [#allocation4], %s710
          %s712 = sand.u32 %s172, 1
          %s713 = smul.addr %s712, 8
          %s714 = scalar_lea.vmem [#allocation10], %s713
          %716 = dma.done %s711, 128
        $region72: #{tpu_custom_call.1} parent=67 // pred_fallthru
          _
      $region68: #{tpu_custom_call.1} parent=5 // pred_fallthru
        _
    $region6: #{tpu_custom_call.1} parent=1 // loop_footer
      %s26 = sadd.s32 1, %s22
    $region7: #{tpu_custom_call.1} parent=1 // loop_footer_branch
      %21 = sbr.rel target = $region3
    $region8: #{tpu_custom_call.1} parent=1 // loop_exit
      _
    %717 = vsyncpa [#allocation3], 1
    %s718 = scalar_lea.sflag [#allocation3], 1
    %719 = vsyncpa %s718, 1
    %720 = vsyncpa [#allocation6], 1
    %s721 = scalar_lea.sflag [#allocation6], 1
    %722 = vsyncpa %s721, 1
    %723 = vsyncpa [#allocation9], 1
    %724 = vsyncpa [#allocation4], 1
    %s725 = scalar_lea.sflag [#allocation4], 1
    %726 = vsyncpa %s725, 1

</llo_original>
